<compile_context>
chip_gen: v7x
topology: tpu7x:2x2x1
jax: 0.10.0
libtpu: 0.0.40
codegen_flags: <defaults>
</compile_context>

<pallas_src>
import jax
import jax.numpy as jnp
from jax.experimental import pallas as pl
from jax.experimental.pallas import tpu as pltpu

ALPHA = 0.25
GAMMA = 2.0            # fixed to 2; the kernel uses an explicit square for (1 - pt)**gamma
IGNORE_INDEX = -1.0

LANES = 128
DEFAULT_BLOCK_ROWS = 8192       # (8192, 128) f32 = 4 MiB per input per pipeline buffer
NUM_PARALLEL = 2                # outer "parallel" grid axis (2 TensorCores on v7x)


def _focal_terms(x, t):
    """Elementwise binary focal loss terms, masked by ignore_index.

    Returns (loss, validf): `loss` is zero at ignored positions, `validf` is a
    0/1 indicator of non-ignored positions.  Pure jnp; shared by the Pallas
    kernel body, the jnp epilogue and the reference.
    """
    # NOTE: exact f32 compare against the -1.0 sentinel (targets must carry it exactly).
    valid = t != jnp.float32(IGNORE_INDEX)
    validf = valid.astype(jnp.float32)
    # Numerically stable BCE-with-logits: max(x,0) - x*t + log1p(exp(-|x|)).
    logpt = jnp.maximum(x, 0.0) - x * t + jnp.log1p(jnp.exp(-jnp.abs(x)))
    # For valid targets (t in {0,1}) logpt >= 0, so the clamp is a no-op; for
    # ignored targets (t == -1) it keeps exp() finite so no Inf/NaN can leak
    # past the select below.
    pt = jnp.exp(-jnp.maximum(logpt, 0.0))
    one_m_pt = 1.0 - pt
    # (1-pt)**gamma with gamma=2 as an explicit square; alpha weighting
    # alpha*t + (1-alpha)*(1-t) folded to 0.75 - 0.5*t.
    loss = one_m_pt * one_m_pt * logpt * (0.75 - 0.5 * t)
    return jnp.where(valid, loss, 0.0), validf


def _focal_loss_kernel(x_ref, t_ref, sum_ref, cnt_ref):
    k = pl.program_id(1)           # reduction step within this parallel slice

    @pl.when(k == 0)
    def _init():
        sum_ref[...] = jnp.zeros_like(sum_ref)
        cnt_ref[...] = jnp.zeros_like(cnt_ref)

    x = x_ref[...].astype(jnp.float32)
    t = t_ref[...].astype(jnp.float32)
    loss, validf = _focal_terms(x, t)

    # Sublane-group reduce: (br,128) -> (br//8, 8, 128) splits along the
    # natural (8,128) vreg tiling, so sum(axis=0) is plain vreg+vreg VPU adds
    # (no XLU) and the resident accumulator stays one vreg per output.
    br = loss.shape[0]
    sum_ref[...] += loss.reshape(br // 8, 8, LANES).sum(axis=0)
    cnt_ref[...] += validf.reshape(br // 8, 8, LANES).sum(axis=0)


def _jnp_partial(x, t):
    loss, validf = _focal_terms(x.astype(jnp.float32), t.astype(jnp.float32))
    return jnp.sum(loss), jnp.sum(validf)


def focal_loss_pallas(logits, targets, *, block_rows=DEFAULT_BLOCK_ROWS):
    """Binary focal loss, mean-reduced over non-ignored elements."""
    n = logits.size
    assert targets.size == n, "logits and targets must have the same number of elements"

    x_flat = jnp.reshape(logits, (-1,))
    t_flat = jnp.reshape(targets, (-1,))

    itemsizes = (jnp.dtype(x_flat.dtype).itemsize, jnp.dtype(t_flat.dtype).itemsize)
    gran = 16 if min(itemsizes) == 2 else 8       # (8,128) f32 tile / (16,128) bf16 tile

    rows_total = n // LANES

    # Small-input fast path: less than one minimal tile -> XLA's fused
    # elementwise+reduce is already at roofline; skip the pallas_call launch.
    if rows_total < gran:
        s, c = _jnp_partial(x_flat, t_flat)
        return s / jnp.maximum(c, 1.0)

    # The kernel only processes FULL (block_rows, 128) blocks (no in-kernel masking).
    block_rows = max(gran, (min(block_rows, rows_total) // gran) * gran)
    num_blocks = rows_total // block_rows
    rows_main = num_blocks * block_rows
    n_main = rows_main * LANES

    # Ragged epilogue: remainder rows (< one block) + <128-element lane tail.
    if n_main < n:
        rem_sum, rem_cnt = _jnp_partial(x_flat[n_main:], t_flat[n_main:])
    else:
        rem_sum = jnp.float32(0.0)
        rem_cnt = jnp.float32(0.0)

    # Lane-dense slab; reshape of the contiguous prefix is layout-only (no pad).
    x2 = jnp.reshape(x_flat[:n_main], (rows_main, LANES))
    t2 = jnp.reshape(t_flat[:n_main], (rows_main, LANES))

    # 2-way parallel split only when it divides the block count exactly:
    # no clamped duplicate blocks; shards across v7x's 2 TCs, free elsewhere.
    num_parallel = (NUM_PARALLEL
                    if (num_blocks >= NUM_PARALLEL and num_blocks % NUM_PARALLEL == 0)
                    else 1)
    steps = num_blocks // num_parallel

    in_spec = pl.BlockSpec((block_rows, LANES), lambda p, k: (p * steps + k, 0))
    out_spec = pl.BlockSpec((8, LANES), lambda p, k: (p, 0))

    # Double-buffered inputs + headroom; explicit so 4 MiB blocks also fit under
    # v5e's 16 MiB scoped-VMEM default (physical VMEM is larger everywhere,
    # including v7x's 64 MiB per TC).
    in_bytes = block_rows * LANES * (itemsizes[0] + itemsizes[1])
    vmem_limit = int(min(max(2 * in_bytes + (4 << 20), 16 << 20), 48 << 20))

    sum_out, cnt_out = pl.pallas_call(
        _focal_loss_kernel,
        out_shape=(
            jax.ShapeDtypeStruct((num_parallel * 8, LANES), jnp.float32),
            jax.ShapeDtypeStruct((num_parallel * 8, LANES), jnp.float32),
        ),
        grid_spec=pltpu.PrefetchScalarGridSpec(
            num_scalar_prefetch=0,
            grid=(num_parallel, steps),
            in_specs=[in_spec, in_spec],
            out_specs=[out_spec, out_spec],
        ),
        compiler_params=pltpu.CompilerParams(
            dimension_semantics=("parallel", "arbitrary"),
            vmem_limit_bytes=vmem_limit,
        ),
    )(x2, t2)

    total_sum = jnp.sum(sum_out) + rem_sum
    total_cnt = jnp.sum(cnt_out) + rem_cnt
    # TODO(synk): reduction='mean' over an all-ignored batch is NaN in PyTorch;
    # we return 0.0 instead (divide by max(count, 1)).
    return total_sum / jnp.maximum(total_cnt, 1.0)


def focal_loss_ref(logits, targets):
    x = jnp.reshape(logits, (-1,)).astype(jnp.float32)
    t = jnp.reshape(targets, (-1,)).astype(jnp.float32)
    loss, validf = _focal_terms(x, t)
    return jnp.sum(loss) / jnp.maximum(jnp.sum(validf), 1.0)


if __name__ == "__main__":
    key = jax.random.PRNGKey(0)

    def make_inputs(k, shape):
        k1, k2, k3 = jax.random.split(k, 3)
        logits = jax.random.normal(k1, shape, dtype=jnp.float32) * 2.0
        targets = jax.random.bernoulli(k2, 0.5, shape).astype(jnp.float32)
        ignore = jax.random.bernoulli(k3, 0.1, shape)
        targets = jnp.where(ignore, jnp.float32(IGNORE_INDEX), targets)
        return logits, targets

    k0, k1, k2, k3 = jax.random.split(key, 4)

    # Binary segmentation logits, NCHW.  2048 elems = 16 lane-rows;
    # block_rows=8 -> 2 full blocks -> grid (2, 1) exercising the parallel split.
    logits, targets = make_inputs(k0, (2, 4, 16, 16))
    out = jax.block_until_ready(focal_loss_pallas(logits, targets, block_rows=8))
    ref = focal_loss_ref(logits, targets)
    assert jnp.allclose(out, ref, rtol=1e-5, atol=1e-6), (out, ref)

    # Multi-step reduction axis: 64 rows / 16-row blocks -> grid (2, 2).
    logits2, targets2 = make_inputs(k1, (2, 1, 64, 64))
    out2 = jax.block_until_ready(focal_loss_pallas(logits2, targets2, block_rows=16))
    ref2 = focal_loss_ref(logits2, targets2)
    assert jnp.allclose(out2, ref2, rtol=1e-5, atol=1e-6), (out2, ref2)

    # Ragged: remainder rows + <128-element lane tail handled by the jnp epilogue.
    logits3, targets3 = make_inputs(k2, (1, 1, 23, 130))
    out3 = jax.block_until_ready(focal_loss_pallas(logits3, targets3, block_rows=8))
    ref3 = focal_loss_ref(logits3, targets3)
    assert jnp.allclose(out3, ref3, rtol=1e-5, atol=1e-6), (out3, ref3)

    # Tiny input: exercises the pure-jnp small-input fast path.
    logits4, targets4 = make_inputs(k3, (3, 5))
    out4 = jax.block_until_ready(focal_loss_pallas(logits4, targets4))
    ref4 = focal_loss_ref(logits4, targets4)
    assert jnp.allclose(out4, ref4, rtol=1e-5, atol=1e-6), (out4, ref4)

    print("KERNEL_OK")
</pallas_src>

<mosaic_0001>
module attributes {stable_mosaic.version = 11 : i64} {
  func.func @_focal_loss_kernel(%arg0: i32, %arg1: i32, %arg2: memref<8x128xf32, #tpu.memory_space<vmem>>, %arg3: memref<8x128xf32, #tpu.memory_space<vmem>>, %arg4: memref<8x128xf32, #tpu.memory_space<vmem>>, %arg5: memref<8x128xf32, #tpu.memory_space<vmem>>) attributes {dimension_semantics = [#tpu.dimension_semantics<parallel>, #tpu.dimension_semantics<arbitrary>], iteration_bounds = array<i64: 2, 1>, scalar_prefetch = 0 : i64, scratch_operands = 0 : i64, tpu.core_type = #tpu.core_type<tc>, window_params = [{transform_indices = @transform_0, window_bounds = array<i64: 8, 128>}, {transform_indices = @transform_1, window_bounds = array<i64: 8, 128>}, {transform_indices = @transform_2, window_bounds = array<i64: 8, 128>}, {transform_indices = @transform_3, window_bounds = array<i64: 8, 128>}]} {
    %c0_i32 = arith.constant 0 : i32
    %0 = arith.cmpi eq, %arg1, %c0_i32 : i32
    %1 = arith.extui %0 : i1 to i32
    %c0_i32_0 = arith.constant 0 : i32
    %2 = arith.cmpi ne, %1, %c0_i32_0 : i32
    scf.if %2 {
      %cst_22 = arith.constant 0.000000e+00 : f32
      %45 = vector.broadcast %cst_22 : f32 to vector<8x128xf32>
      %c0_23 = arith.constant 0 : index
      %c0_24 = arith.constant 0 : index
      %46 = vector.load %arg4[%c0_23, %c0_24] : memref<8x128xf32, #tpu.memory_space<vmem>>, vector<8x128xf32>
      tpu.vector_store %arg4[%c0_23, %c0_24], %45 {strides = array<i32>} : memref<8x128xf32, #tpu.memory_space<vmem>>, vector<8x128xf32>,
      %cst_25 = arith.constant 0.000000e+00 : f32
      %47 = vector.broadcast %cst_25 : f32 to vector<8x128xf32>
      %c0_26 = arith.constant 0 : index
      %c0_27 = arith.constant 0 : index
      %48 = vector.load %arg5[%c0_26, %c0_27] : memref<8x128xf32, #tpu.memory_space<vmem>>, vector<8x128xf32>
      tpu.vector_store %arg5[%c0_26, %c0_27], %47 {strides = array<i32>} : memref<8x128xf32, #tpu.memory_space<vmem>>, vector<8x128xf32>,
    } else {
    }
    %c0 = arith.constant 0 : index
    %c0_1 = arith.constant 0 : index
    %3 = vector.load %arg2[%c0, %c0_1] : memref<8x128xf32, #tpu.memory_space<vmem>>, vector<8x128xf32>
    %c0_2 = arith.constant 0 : index
    %c0_3 = arith.constant 0 : index
    %4 = vector.load %arg3[%c0_2, %c0_3] : memref<8x128xf32, #tpu.memory_space<vmem>>, vector<8x128xf32>
    %cst = arith.constant -1.000000e+00 : f32
    %5 = vector.broadcast %cst : f32 to vector<8x128xf32>
    %6 = arith.cmpf one, %4, %5 : vector<8x128xf32>
    %7 = arith.extui %6 : vector<8x128xi1> to vector<8x128xi32>
    %8 = arith.sitofp %7 : vector<8x128xi32> to vector<8x128xf32>
    %cst_4 = arith.constant 0.000000e+00 : f32
    %9 = vector.broadcast %cst_4 : f32 to vector<8x128xf32>
    %10 = arith.maximumf %3, %9 : vector<8x128xf32>
    %11 = arith.mulf %3, %4 : vector<8x128xf32>
    %12 = arith.subf %10, %11 : vector<8x128xf32>
    %13 = math.absf %3 : vector<8x128xf32>
    %cst_5 = arith.constant 0.000000e+00 : f32
    %14 = vector.broadcast %cst_5 : f32 to vector<8x128xf32>
    %15 = arith.subf %14, %13 : vector<8x128xf32>
    %16 = math.exp %15 : vector<8x128xf32>
    %17 = math.log1p %16 : vector<8x128xf32>
    %18 = arith.addf %12, %17 : vector<8x128xf32>
    %cst_6 = arith.constant 0.000000e+00 : f32
    %19 = vector.broadcast %cst_6 : f32 to vector<8x128xf32>
    %20 = arith.maximumf %18, %19 : vector<8x128xf32>
    %cst_7 = arith.constant 0.000000e+00 : f32
    %21 = vector.broadcast %cst_7 : f32 to vector<8x128xf32>
    %22 = arith.subf %21, %20 : vector<8x128xf32>
    %23 = math.exp %22 : vector<8x128xf32>
    %cst_8 = arith.constant 1.000000e+00 : f32
    %24 = vector.broadcast %cst_8 : f32 to vector<8x128xf32>
    %25 = arith.subf %24, %23 : vector<8x128xf32>
    %26 = arith.mulf %25, %25 : vector<8x128xf32>
    %27 = arith.mulf %26, %18 : vector<8x128xf32>
    %cst_9 = arith.constant 5.000000e-01 : f32
    %28 = vector.broadcast %cst_9 : f32 to vector<8x128xf32>
    %29 = arith.mulf %28, %4 : vector<8x128xf32>
    %cst_10 = arith.constant 7.500000e-01 : f32
    %30 = vector.broadcast %cst_10 : f32 to vector<8x128xf32>
    %31 = arith.subf %30, %29 : vector<8x128xf32>
    %32 = arith.mulf %27, %31 : vector<8x128xf32>
    %cst_11 = arith.constant 0.000000e+00 : f32
    %33 = vector.broadcast %cst_11 : f32 to vector<8x128xf32>
    %34 = arith.select %6, %32, %33 : vector<8x128xi1>, vector<8x128xf32>
    %c0_12 = arith.constant 0 : index
    %c0_13 = arith.constant 0 : index
    %35 = vector.load %arg4[%c0_12, %c0_13] : memref<8x128xf32, #tpu.memory_space<vmem>>, vector<8x128xf32>
    %36 = vector.shape_cast %34 : vector<8x128xf32> to vector<1x8x128xf32>
    %cst_14 = arith.constant dense<0.000000e+00> : vector<8x128xf32>
    %37 = vector.multi_reduction <add>, %36, %cst_14 [0] : vector<1x8x128xf32> to vector<8x128xf32>
    %38 = arith.addf %35, %37 : vector<8x128xf32>
    %c0_15 = arith.constant 0 : index
    %c0_16 = arith.constant 0 : index
    %39 = vector.load %arg4[%c0_15, %c0_16] : memref<8x128xf32, #tpu.memory_space<vmem>>, vector<8x128xf32>
    tpu.vector_store %arg4[%c0_15, %c0_16], %38 {strides = array<i32>} : memref<8x128xf32, #tpu.memory_space<vmem>>, vector<8x128xf32>,
    %c0_17 = arith.constant 0 : index
    %c0_18 = arith.constant 0 : index
    %40 = vector.load %arg5[%c0_17, %c0_18] : memref<8x128xf32, #tpu.memory_space<vmem>>, vector<8x128xf32>
    %41 = vector.shape_cast %8 : vector<8x128xf32> to vector<1x8x128xf32>
    %cst_19 = arith.constant dense<0.000000e+00> : vector<8x128xf32>
    %42 = vector.multi_reduction <add>, %41, %cst_19 [0] : vector<1x8x128xf32> to vector<8x128xf32>
    %43 = arith.addf %40, %42 : vector<8x128xf32>
    %c0_20 = arith.constant 0 : index
    %c0_21 = arith.constant 0 : index
    %44 = vector.load %arg5[%c0_20, %c0_21] : memref<8x128xf32, #tpu.memory_space<vmem>>, vector<8x128xf32>
    tpu.vector_store %arg5[%c0_20, %c0_21], %43 {strides = array<i32>} : memref<8x128xf32, #tpu.memory_space<vmem>>, vector<8x128xf32>,
    return
  }
  func.func @transform_0(%arg0: i32, %arg1: i32) -> (i32, i32) {
    %c1_i32 = arith.constant 1 : i32
    %0 = arith.muli %arg0, %c1_i32 : i32
    %1 = arith.addi %0, %arg1 : i32
    %c0_i32 = arith.constant 0 : i32
    %c0_i32_0 = arith.constant 0 : i32
    return %1, %c0_i32 : i32, i32
  }
  func.func @transform_1(%arg0: i32, %arg1: i32) -> (i32, i32) {
    %c1_i32 = arith.constant 1 : i32
    %0 = arith.muli %arg0, %c1_i32 : i32
    %1 = arith.addi %0, %arg1 : i32
    %c0_i32 = arith.constant 0 : i32
    %c0_i32_0 = arith.constant 0 : i32
    return %1, %c0_i32 : i32, i32
  }
  func.func @transform_2(%arg0: i32, %arg1: i32) -> (i32, i32) {
    %c0_i32 = arith.constant 0 : i32
    %c0_i32_0 = arith.constant 0 : i32
    return %arg0, %c0_i32 : i32, i32
  }
  func.func @transform_3(%arg0: i32, %arg1: i32) -> (i32, i32) {
    %c0_i32 = arith.constant 0 : i32
    %c0_i32_0 = arith.constant 0 : i32
    return %arg0, %c0_i32 : i32, i32
  }
}

</mosaic_0001>

<llo_original>
// kernel: tpu_custom_call.1
$region0: #{tpu_custom_call.1}
  #allocation0 [shape = 'u32[]', space=smem, size = 0x4, offset = 0x4, fixed_abs, tag = 'smem constant byte address 0x4 - core index']
  #allocation1 [shape = 'u32[144,128]{1,0:T(1,128)}', space=vmem, size = 0x12000, scoped, tag = 'internal scratch']
  %s0 = inlined_call_operand.hbm [shape: f32[16,128], index: 0, kind: input, shape index: {}]
  %s1 = inlined_call_operand.hbm [shape: f32[16,128], index: 1, kind: input, shape index: {}]
  %s2 = inlined_call_operand.hbm [shape: f32[16,128], index: 2, kind: output, shape index: {0}]
  %s3 = inlined_call_operand.hbm [shape: f32[16,128], index: 3, kind: output, shape index: {1}]
  %4 = xla_tuple %s2, %s3
  %s5 = sld [smem:[#allocation0]]
  $region61: #{tpu_custom_call.1} parent=0
    _
  %s7 = ssub.s32 1, %s5
  %s8 = scalar_select 0, %s7, %s5
  $region1: #{tpu_custom_call.1} parent=0
    #allocation2 [shape = 'u8[8192]{0}', space=vmem, size = 0x2000, scoped, tag = 'input window, operand 0']
    #allocation3 [shape = 's32[2]{0}', space=sflag, size = 0x8, scoped, tag = 'scoped memory for tpu_custom_call.1']
    #allocation4 [shape = 's32[2]{0}', space=sflag, size = 0x8, scoped, tag = 'scoped memory for tpu_custom_call.1']
    #allocation5 [shape = 'u8[8192]{0}', space=vmem, size = 0x2000, scoped, tag = 'input window, operand 1']
    #allocation6 [shape = 's32[2]{0}', space=sflag, size = 0x8, scoped, tag = 'scoped memory for tpu_custom_call.1']
    #allocation7 [shape = 'u8[8192]{0}', space=vmem, size = 0x2000, scoped, tag = 'output window, operand 0']
    #allocation8 [shape = 'u8[8192]{0}', space=vmem, size = 0x2000, scoped, tag = 'output window, operand 1']
    #allocation9 [shape = 's32[2]{0}', space=sflag, size = 0x8, scoped, tag = 'scoped memory for tpu_custom_call.1']
    %9 = vsyncpa [#allocation3], 0
    %s10 = scalar_lea.sflag [#allocation3], 1
    %11 = vsyncpa %s10, 0
    %12 = vsyncpa [#allocation6], 0
    %s13 = scalar_lea.sflag [#allocation6], 1
    %14 = vsyncpa %s13, 0
    %15 = vsyncpa [#allocation4], 0
    %s16 = scalar_lea.sflag [#allocation4], 1
    %17 = vsyncpa %s16, 0
    %18 = vsyncpa [#allocation9], 0
    %s19 = scalar_lea.sflag [#allocation9], 1
    %20 = vsyncpa %s19, 0
    loop: start=0, step=1, limit=4
    $region2: #{tpu_custom_call.1} parent=1 // loop_pre_header
      _
    $region3: #{tpu_custom_call.1} parent=1 // loop_header
      %s22 = sphi 0, %s26
      %p23 = scmp.ge.s32.totalorder %s22, 4
      %s29 = sphi 0, %s41
      %s30 = sphi 0, %s37
      %s31 = sphi 0, %s29
      %s32 = sphi 0, %s30
      %s33 = sphi 0, %s31
      %s34 = sphi 0, %s32
      %s46 = sphi 0, %s48
      %s49 = sphi 0, %s46
      %s50 = sphi 0, %s49
      %s66 = sphi 0, %s50
      %s74 = sphi 0, %s76
      %s77 = sphi 0, %s74
      %s78 = sphi 0, %s77
      %s94 = sphi 0, %s78
      %s100 = sphi 0, %s102
      %s103 = sphi 0, %s100
      %s104 = sphi 0, %s103
      %s120 = sphi 0, %s104
      %s126 = sphi 0, %s128
      %s129 = sphi 0, %s126
      %s130 = sphi 0, %s129
      %s146 = sphi 0, %s130
    $region4: #{tpu_custom_call.1} parent=1 // loop_header_branch
      %25 = sbr.rel (%p23) target = $region8
    $region5: #{tpu_custom_call.1} parent=1 // loop_body
      %s27 = ssub.s32 %s22, 1
      %s28 = ssub.s32 %s22, 2
      %s35 = sadd.s32 1, %s30
      %p36 = scmp.ge.s32.totalorder %s35, 1
      %s37 = scalar_select %p36, 0, %s35
      %s38 = sadd.s32 1, %s29
      %s39 = scalar_select %p36, %s38, %s29
      %p40 = scmp.ge.s32.totalorder %s39, 2
      %s41 = scalar_select %p40, 0, %s39
      %s42 = sadd.s32 %s29, %s30
      %s43 = sadd.s32 %s41, %s37
      %s44 = ssub.s32 %s42, %s43
      %p45 = scmp.eq.s32.totalorder %s44, 0
      %s47 = sadd.s32 %s46, 1
      %s48 = scalar_select %p45, %s46, %s47
      %p51 = pneg %p45
      %p52 = scmp.eq.s32.totalorder %s22, 1
      %p53 = por %p51, %p52
      %p54 = scmp.ne.s32.totalorder %s46, %s49
      %p55 = scmp.eq.s32.totalorder %s22, 0
      %p56 = por %p54, %p55
      %p57 = scmp.ne.s32.totalorder %s46, %s49
      %p58 = scmp.eq.s32.totalorder %s27, 1
      %p59 = por %p57, %p58
      %p60 = scmp.ne.s32.totalorder %s49, %s50
      %p61 = scmp.eq.s32.totalorder %s27, 0
      %p62 = por %p60, %p61
      %p63 = scmp.ne.s32.totalorder %s49, %s50
      %p64 = scmp.eq.s32.totalorder %s28, 1
      %p65 = por %p63, %p64
      %p67 = scmp.ne.s32.totalorder %s50, %s66
      %p68 = scmp.eq.s32.totalorder %s28, 0
      %p69 = por %p67, %p68
      %s70 = sadd.s32 %s29, %s30
      %s71 = sadd.s32 %s41, %s37
      %s72 = ssub.s32 %s70, %s71
      %p73 = scmp.eq.s32.totalorder %s72, 0
      %s75 = sadd.s32 %s74, 1
      %s76 = scalar_select %p73, %s74, %s75
      %p79 = pneg %p73
      %p80 = scmp.eq.s32.totalorder %s22, 1
      %p81 = por %p79, %p80
      %p82 = scmp.ne.s32.totalorder %s74, %s77
      %p83 = scmp.eq.s32.totalorder %s22, 0
      %p84 = por %p82, %p83
      %p85 = scmp.ne.s32.totalorder %s74, %s77
      %p86 = scmp.eq.s32.totalorder %s27, 1
      %p87 = por %p85, %p86
      %p88 = scmp.ne.s32.totalorder %s77, %s78
      %p89 = scmp.eq.s32.totalorder %s27, 0
      %p90 = por %p88, %p89
      %p91 = scmp.ne.s32.totalorder %s77, %s78
      %p92 = scmp.eq.s32.totalorder %s28, 1
      %p93 = por %p91, %p92
      %p95 = scmp.ne.s32.totalorder %s78, %s94
      %p96 = scmp.eq.s32.totalorder %s28, 0
      %p97 = por %p95, %p96
      %s98 = ssub.s32 %s29, %s41
      %p99 = scmp.eq.s32.totalorder %s98, 0
      %s101 = sadd.s32 %s100, 1
      %s102 = scalar_select %p99, %s100, %s101
      %p105 = pneg %p99
      %p106 = scmp.eq.s32.totalorder %s22, 1
      %p107 = por %p105, %p106
      %p108 = scmp.ne.s32.totalorder %s100, %s103
      %p109 = scmp.eq.s32.totalorder %s22, 0
      %p110 = por %p108, %p109
      %p111 = scmp.ne.s32.totalorder %s100, %s103
      %p112 = scmp.eq.s32.totalorder %s27, 1
      %p113 = por %p111, %p112
      %p114 = scmp.ne.s32.totalorder %s103, %s104
      %p115 = scmp.eq.s32.totalorder %s27, 0
      %p116 = por %p114, %p115
      %p117 = scmp.ne.s32.totalorder %s103, %s104
      %p118 = scmp.eq.s32.totalorder %s28, 1
      %p119 = por %p117, %p118
      %p121 = scmp.ne.s32.totalorder %s104, %s120
      %p122 = scmp.eq.s32.totalorder %s28, 0
      %p123 = por %p121, %p122
      %s124 = ssub.s32 %s29, %s41
      %p125 = scmp.eq.s32.totalorder %s124, 0
      %s127 = sadd.s32 %s126, 1
      %s128 = scalar_select %p125, %s126, %s127
      %p131 = pneg %p125
      %p132 = scmp.eq.s32.totalorder %s22, 1
      %p133 = por %p131, %p132
      %p134 = scmp.ne.s32.totalorder %s126, %s129
      %p135 = scmp.eq.s32.totalorder %s22, 0
      %p136 = por %p134, %p135
      %p137 = scmp.ne.s32.totalorder %s126, %s129
      %p138 = scmp.eq.s32.totalorder %s27, 1
      %p139 = por %p137, %p138
      %p140 = scmp.ne.s32.totalorder %s129, %s130
      %p141 = scmp.eq.s32.totalorder %s27, 0
      %p142 = por %p140, %p141
      %p143 = scmp.ne.s32.totalorder %s129, %s130
      %p144 = scmp.eq.s32.totalorder %s28, 1
      %p145 = por %p143, %p144
      %p147 = scmp.ne.s32.totalorder %s130, %s146
      %p148 = scmp.eq.s32.totalorder %s28, 0
      %p149 = por %p147, %p148
      %p150 = scmp.le.s32.totalorder 1, %s22
      %p151 = scmp.lt.s32.totalorder %s22, 3
      %p152 = pnand %p150, %p151
      %p153 = pneg %p152
      // Predicated region
      $region9: #{tpu_custom_call.1} parent=5 // pred_check
        _
      $region10: #{tpu_custom_call.1} parent=5 // pred_check_branch
        %155 = sbr.rel (%p152) target = $region12
      $region11: #{tpu_custom_call.1} parent=5 // pred_region
        %s156 = ssub.s32 %s22, 1
      $region12: #{tpu_custom_call.1} parent=5 // pred_fallthru
        _
      %p157 = scmp.lt.s32.totalorder %s22, 2
      // Predicated region
      $region13: #{tpu_custom_call.1} parent=5 // pred_check
        %p158 = pneg %p157
      $region14: #{tpu_custom_call.1} parent=5 // pred_check_branch
        %160 = sbr.rel (%p158) target = $region16
      $region15: #{tpu_custom_call.1} parent=5 // pred_region
        // Predicated region
        $region17: #{tpu_custom_call.1} parent=15 // pred_check
          %p161 = pneg %p56
        $region18: #{tpu_custom_call.1} parent=15 // pred_check_branch
          %163 = sbr.rel (%p161) target = $region20
        $region19: #{tpu_custom_call.1} parent=15 // pred_region
          %s164 = sand.u32 %s46, 1
          %s165 = scalar_lea.sflag [#allocation3], %s164
          %s166 = sand.u32 %s46, 1
          %s167 = smul.addr %s166, 8
          %s168 = scalar_lea.vmem [#allocation2], %s167
          %s169 = sadd.s32 %s29, %s30
          %s171 = ssub.s32 128, 128
          %172 = vsyncadd %s165, %s171
          %s173 = smul.addr %s169, 128
          %s174 = scalar_lea.hbm %s0, %s173
          %s176 = sshll.u32 %s168, 4
          %s177 = int_to_ptr.vmem [resolvable:$true] %s176
          %179 = dma.hbm_to_vmem [thread:$0]  %s174, 128, %s177, %s165
        $region20: #{tpu_custom_call.1} parent=15 // pred_fallthru
          _
        // Predicated region
        $region21: #{tpu_custom_call.1} parent=15 // pred_check
          %p180 = pneg %p84
        $region22: #{tpu_custom_call.1} parent=15 // pred_check_branch
          %182 = sbr.rel (%p180) target = $region24
        $region23: #{tpu_custom_call.1} parent=15 // pred_region
          %s183 = sand.u32 %s74, 1
          %s184 = scalar_lea.sflag [#allocation6], %s183
          %s185 = sand.u32 %s74, 1
          %s186 = smul.addr %s185, 8
          %s187 = scalar_lea.vmem [#allocation5], %s186
          %s188 = sadd.s32 %s29, %s30
          %s190 = ssub.s32 128, 128
          %191 = vsyncadd %s184, %s190
          %s192 = smul.addr %s188, 128
          %s193 = scalar_lea.hbm %s1, %s192
          %s195 = sshll.u32 %s187, 4
          %s196 = int_to_ptr.vmem [resolvable:$true] %s195
          %198 = dma.hbm_to_vmem [thread:$0]  %s193, 128, %s196, %s184
        $region24: #{tpu_custom_call.1} parent=15 // pred_fallthru
          _
      $region16: #{tpu_custom_call.1} parent=5 // pred_fallthru
        _
      %p199 = scmp.le.s32.totalorder 1, %s22
      %p200 = scmp.lt.s32.totalorder %s22, 3
      %p201 = pnand %p199, %p200
      %p202 = pneg %p201
      // Predicated region
      $region25: #{tpu_custom_call.1} parent=5 // pred_check
        _
      $region26: #{tpu_custom_call.1} parent=5 // pred_check_branch
        %204 = sbr.rel (%p201) target = $region28
      $region27: #{tpu_custom_call.1} parent=5 // pred_region
        %s205 = ssub.s32 %s22, 1
        %s206 = sand.u32 %s49, 1
        %s207 = scalar_lea.sflag [#allocation3], %s206
        %s208 = sand.u32 %s49, 1
        %s209 = smul.addr %s208, 8
        %s210 = scalar_lea.vmem [#allocation2], %s209
        // Predicated region
        $region29: #{tpu_custom_call.1} parent=27 // pred_check
          %p211 = pneg %p62
        $region30: #{tpu_custom_call.1} parent=27 // pred_check_branch
          %213 = sbr.rel (%p211) target = $region32
        $region31: #{tpu_custom_call.1} parent=27 // pred_region
          %214 = dma.done %s207, 128
        $region32: #{tpu_custom_call.1} parent=27 // pred_fallthru
          _
        %s215 = sand.u32 %s77, 1
        %s216 = scalar_lea.sflag [#allocation6], %s215
        %s217 = sand.u32 %s77, 1
        %s218 = smul.addr %s217, 8
        %s219 = scalar_lea.vmem [#allocation5], %s218
        // Predicated region
        $region33: #{tpu_custom_call.1} parent=27 // pred_check
          %p220 = pneg %p90
        $region34: #{tpu_custom_call.1} parent=27 // pred_check_branch
          %222 = sbr.rel (%p220) target = $region36
        $region35: #{tpu_custom_call.1} parent=27 // pred_region
          %223 = dma.done %s216, 128
        $region36: #{tpu_custom_call.1} parent=27 // pred_fallthru
          _
        %s224 = sand.u32 %s49, 1
        %s225 = scalar_lea.sflag [#allocation3], %s224
        %s226 = sand.u32 %s49, 1
        %s227 = smul.addr %s226, 8
        %s228 = scalar_lea.vmem [#allocation2], %s227
        %p229 = pneg %p62
        %p230 = pneg %p59
        %s231 = sand.u32 %s77, 1
        %s232 = scalar_lea.sflag [#allocation6], %s231
        %s233 = sand.u32 %s77, 1
        %s234 = smul.addr %s233, 8
        %s235 = scalar_lea.vmem [#allocation5], %s234
        %p236 = pneg %p90
        %p237 = pneg %p87
        %p238 = pneg %p116
        %p239 = pneg %p113
        %s240 = sand.u32 %s103, 1
        %s241 = scalar_lea.sflag [#allocation4], %s240
        %s242 = sand.u32 %s103, 1
        %s243 = smul.addr %s242, 8
        %s244 = scalar_lea.vmem [#allocation7], %s243
        %p245 = pneg %p142
        %p246 = pneg %p139
        %s247 = sand.u32 %s129, 1
        %s248 = scalar_lea.sflag [#allocation9], %s247
        %s249 = sand.u32 %s129, 1
        %s250 = smul.addr %s249, 8
        %s251 = scalar_lea.vmem [#allocation8], %s250
        %s252 = sadd.s32 %s31, %s32
        %s253 = sadd.s32 %s31, %s32
        %p254 = scmp.eq.s32.totalorder %s32, 0
        // Predicated region
        $region37: #{tpu_custom_call.1} parent=27 // pred_check
          %p255 = pneg %p254
        $region38: #{tpu_custom_call.1} parent=27 // pred_check_branch
          %257 = sbr.rel (%p255) target = $region40
        $region39: #{tpu_custom_call.1} parent=27 // pred_region
          %258 = vst [vmem:[%s244] sm:$0xff] 0.0
          %259 = vst [vmem:[%s251] sm:$0xff] 0.0
        $region40: #{tpu_custom_call.1} parent=27 // pred_fallthru
          _
        %v260 = vld [vmem:[%s210] sm:$0xff]
        %v261 = vld [vmem:[%s219] sm:$0xff]
        %vm262 = vcmp.ne.f32.partialorder %v261, -1.0
        %v263 = vsel %vm262, 1, 0
        %v264 = vcvt.s32.f32 %v263
        %v265 = vmax.f32 %v260, 0.0
        %v266 = vmul.f32 %v260, %v261
        %v267 = vsub.f32 %v265, %v266
        %v268 = vand.u32 2147483647, %v260
        %v269 = vsub.f32 0.0, %v268
        %v270 = vmul.f32 %v269, 1.442695
        %v271 = vpow.pop %v270
        %v272 = vadd.f32 %v271, 1.0
        %v273 = vlog2.pop %v272
        %v274 = vmul.f32 %v273, 0.6931472
        %v275 = vmul.f32 -0.5, %v271
        %v276 = vadd.f32 %v275, 1.0
        %v277 = vmul.f32 %v276, %v271
        %v278 = vand.u32 2147483647, %v271
        %vm279 = vcmp.lt.f32.partialorder %v278, 0.0004427343
        %v280 = vsel %vm279, %v277, %v274
        %v281 = vadd.f32 %v267, %v280
        %v282 = vmax.f32 %v281, 0.0
        %v283 = vsub.f32 0.0, %v282
        %v284 = vmul.f32 %v283, 1.442695
        %v285 = vpow.pop %v284
        %v286 = vsub.f32 1.0, %v285
        %v287 = vmul.f32 %v286, %v286
        %v288 = vmul.f32 %v287, %v281
        %v289 = vmul.f32 %v261, 0.5
        %v290 = vsub.f32 0.75, %v289
        %v291 = vmul.f32 %v288, %v290
        %v292 = vsel %vm262, %v291, 0.0
        %v293 = vld [vmem:[%s244] sm:$0xff]
        %v294 = vadd.f32 %v292, 0.0
        %v295 = vadd.f32 %v293, %v294
        %296 = vst [vmem:[%s244] sm:$0xff] %v295
        %v297 = vld [vmem:[%s251] sm:$0xff]
        %v298 = vadd.f32 %v264, 0.0
        %v299 = vadd.f32 %v297, %v298
        %300 = vst [vmem:[%s251] sm:$0xff] %v299
        %s301 = sand.u32 %s103, 1
        %s302 = scalar_lea.sflag [#allocation4], %s301
        %s303 = sand.u32 %s103, 1
        %s304 = smul.addr %s303, 8
        %s305 = scalar_lea.vmem [#allocation7], %s304
        %s306 = sand.u32 %s129, 1
        %s307 = scalar_lea.sflag [#allocation9], %s306
        %s308 = sand.u32 %s129, 1
        %s309 = smul.addr %s308, 8
        %s310 = scalar_lea.vmem [#allocation8], %s309
        // Predicated region
        $region41: #{tpu_custom_call.1} parent=27 // pred_check
          %p311 = pneg %p113
        $region42: #{tpu_custom_call.1} parent=27 // pred_check_branch
          %313 = sbr.rel (%p311) target = $region44
        $region43: #{tpu_custom_call.1} parent=27 // pred_region
          %s315 = ssub.s32 128, 128
          %316 = vsyncadd %s302, %s315
          %s317 = smul.addr %s31, 128
          %s318 = scalar_lea.hbm %s2, %s317
          %s320 = sshll.u32 %s305, 4
          %s321 = int_to_ptr.vmem [resolvable:$true] %s320
          %323 = dma.vmem_to_hbm [thread:$0]  %s321, 128, %s318, %s302
        $region44: #{tpu_custom_call.1} parent=27 // pred_fallthru
          _
        // Predicated region
        $region45: #{tpu_custom_call.1} parent=27 // pred_check
          %p324 = pneg %p139
        $region46: #{tpu_custom_call.1} parent=27 // pred_check_branch
          %326 = sbr.rel (%p324) target = $region48
        $region47: #{tpu_custom_call.1} parent=27 // pred_region
          %s328 = ssub.s32 128, 128
          %329 = vsyncadd %s307, %s328
          %s330 = smul.addr %s31, 128
          %s331 = scalar_lea.hbm %s3, %s330
          %s333 = sshll.u32 %s310, 4
          %s334 = int_to_ptr.vmem [resolvable:$true] %s333
          %336 = dma.vmem_to_hbm [thread:$0]  %s334, 128, %s331, %s307
        $region48: #{tpu_custom_call.1} parent=27 // pred_fallthru
          _
      $region28: #{tpu_custom_call.1} parent=5 // pred_fallthru
        _
      %p337 = scmp.le.s32.totalorder 2, %s22
      // Predicated region
      $region49: #{tpu_custom_call.1} parent=5 // pred_check
        %p338 = pneg %p337
      $region50: #{tpu_custom_call.1} parent=5 // pred_check_branch
        %340 = sbr.rel (%p338) target = $region52
      $region51: #{tpu_custom_call.1} parent=5 // pred_region
        %s341 = ssub.s32 %s22, 2
        // Predicated region
        $region53: #{tpu_custom_call.1} parent=51 // pred_check
          %p342 = pneg %p119
        $region54: #{tpu_custom_call.1} parent=51 // pred_check_branch
          %344 = sbr.rel (%p342) target = $region56
        $region55: #{tpu_custom_call.1} parent=51 // pred_region
          %s345 = sand.u32 %s104, 1
          %s346 = scalar_lea.sflag [#allocation4], %s345
          %s347 = sand.u32 %s104, 1
          %s348 = smul.addr %s347, 8
          %s349 = scalar_lea.vmem [#allocation7], %s348
          %350 = dma.done %s346, 128
        $region56: #{tpu_custom_call.1} parent=51 // pred_fallthru
          _
        // Predicated region
        $region57: #{tpu_custom_call.1} parent=51 // pred_check
          %p351 = pneg %p145
        $region58: #{tpu_custom_call.1} parent=51 // pred_check_branch
          %353 = sbr.rel (%p351) target = $region60
        $region59: #{tpu_custom_call.1} parent=51 // pred_region
          %s354 = sand.u32 %s130, 1
          %s355 = scalar_lea.sflag [#allocation9], %s354
          %s356 = sand.u32 %s130, 1
          %s357 = smul.addr %s356, 8
          %s358 = scalar_lea.vmem [#allocation8], %s357
          %359 = dma.done %s355, 128
        $region60: #{tpu_custom_call.1} parent=51 // pred_fallthru
          _
      $region52: #{tpu_custom_call.1} parent=5 // pred_fallthru
        _
    $region6: #{tpu_custom_call.1} parent=1 // loop_footer
      %s26 = sadd.s32 1, %s22
    $region7: #{tpu_custom_call.1} parent=1 // loop_footer_branch
      %21 = sbr.rel target = $region3
    $region8: #{tpu_custom_call.1} parent=1 // loop_exit
      _
    %360 = vsyncpa [#allocation3], 1
    %s361 = scalar_lea.sflag [#allocation3], 1
    %362 = vsyncpa %s361, 1
    %363 = vsyncpa [#allocation6], 1
    %s364 = scalar_lea.sflag [#allocation6], 1
    %365 = vsyncpa %s364, 1
    %366 = vsyncpa [#allocation4], 1
    %s367 = scalar_lea.sflag [#allocation4], 1
    %368 = vsyncpa %s367, 1
    %369 = vsyncpa [#allocation9], 1
    %s370 = scalar_lea.sflag [#allocation9], 1
    %371 = vsyncpa %s370, 1

</llo_original>
